<compile_context>
chip_gen: v7x
topology: tpu7x:2x2x1
jax: 0.10.0
libtpu: 0.0.40
codegen_flags: <defaults>
</compile_context>

<pallas_src>
import functools
import numpy as np

import jax
import jax.numpy as jnp
from jax.experimental import pallas as pl
from jax.experimental.pallas import tpu as pltpu

# ---------------- small, module-consistent config ----------------
IN_CH = 4
OUT_CH = 8
DIM = 32           # "dim" (96 in the original module; shrunk for a small test)
DEPTH = 2
NUM_HEADS = 2
KSIZE = 3
DILATION = 1
PADDING = 1        # keeps H,W unchanged, as SwinEncoder.forward implicitly assumes
WINDOW = 7         # Swin BasicLayer default window_size
MLP_RATIO = 4
LN_EPS = 1e-5

ROW_TILE_CAP = 512                 # largest row tile for the token-matrix kernels
VMEM_LIMIT = 32 * 1024 * 1024      # explicit scoped-VMEM budget (safe on v5e/v6e/v7x)


def _params(sem):
    return pltpu.CompilerParams(dimension_semantics=sem,
                                vmem_limit_bytes=VMEM_LIMIT)


def _pick_row_tile(M, cap=ROW_TILE_CAP):
    """Largest row tile <= cap that divides M; whole array if no good divisor."""
    if M <= cap:
        return M
    for t in range(cap, 7, -1):
        if M % t == 0:
            return t
    return M


# ---------------- Pallas kernels ----------------
def _matmul_bias_kernel(x_ref, w_ref, b_ref, o_ref):
    o_ref[...] = (jnp.dot(x_ref[...], w_ref[...],
                          preferred_element_type=jnp.float32) + b_ref[...])


def _ln_matmul_bias_kernel(x_ref, g_ref, b_ref, w_ref, bo_ref, o_ref):
    # fused LayerNorm -> matmul (+bias): used for final norm + 1x1 output_proj
    x = x_ref[...]
    mu = jnp.mean(x, axis=-1, keepdims=True)
    var = jnp.mean(jnp.square(x - mu), axis=-1, keepdims=True)
    xn = (x - mu) * jax.lax.rsqrt(var + LN_EPS) * g_ref[...] + b_ref[...]
    o_ref[...] = (jnp.dot(xn, w_ref[...], preferred_element_type=jnp.float32)
                  + bo_ref[...])


def _ln_mlp_residual_kernel(x_ref, g_ref, b_ref, w1_ref, b1_ref, w2_ref, b2_ref,
                            o_ref):
    # fused norm2 -> fc1 -> GELU(erf) -> fc2 -> + residual
    x = x_ref[...]
    mu = jnp.mean(x, axis=-1, keepdims=True)
    var = jnp.mean(jnp.square(x - mu), axis=-1, keepdims=True)
    xn = (x - mu) * jax.lax.rsqrt(var + LN_EPS) * g_ref[...] + b_ref[...]
    h = jnp.dot(xn, w1_ref[...], preferred_element_type=jnp.float32) + b1_ref[...]
    h = jax.nn.gelu(h, approximate=False)          # nn.GELU default (erf)
    y = jnp.dot(h, w2_ref[...], preferred_element_type=jnp.float32) + b2_ref[...]
    o_ref[...] = x + y


def _swin_attn_kernel(x_ref, valid_ref, g1_ref, b1_ref, wqkv_t_ref, bqkv_ref,
                      wp_h_ref, bp_ref, bias_ref, mask_ref, o_ref, *, num_heads):
    # One grid step = all nW windows of one batch image.
    x = x_ref[...]                                  # (Wb, N, C) raw (pre-norm) tokens
    Wb, N, C = x.shape
    hd = C // num_heads
    scale = float(hd) ** -0.5

    # fused norm1; 'valid' zeroes padded tokens so semantics match the reference
    # (LayerNorm applied before zero-padding).
    mu = jnp.mean(x, axis=-1, keepdims=True)
    var = jnp.mean(jnp.square(x - mu), axis=-1, keepdims=True)
    xn = (x - mu) * jax.lax.rsqrt(var + LN_EPS) * g1_ref[...] + b1_ref[...]
    xn = xn * valid_ref[...]

    # QKV projection for all windows at once (batched over windows on the MXU).
    wqkv_b = jnp.broadcast_to(wqkv_t_ref[...], (Wb, 3 * C, C))
    qkv = jnp.einsum("wnc,wkc->wnk", xn, wqkv_b,
                     preferred_element_type=jnp.float32) + bqkv_ref[...]

    mask = mask_ref[...]                            # (1, N, N) or (Wb, N, N)
    out = None
    for h in range(num_heads):                      # static unroll (num_heads small)
        q = qkv[:, :, h * hd:(h + 1) * hd] * scale          # (Wb, N, hd)
        k = qkv[:, :, C + h * hd:C + (h + 1) * hd]
        v = qkv[:, :, 2 * C + h * hd:2 * C + (h + 1) * hd]
        s = jnp.einsum("wnd,wmd->wnm", q, k,
                       preferred_element_type=jnp.float32)   # (Wb, N, N)
        s = s + bias_ref[h] + mask
        s = s - jnp.max(s, axis=-1, keepdims=True)
        p = jnp.exp(s)
        p = p / jnp.sum(p, axis=-1, keepdims=True)
        oh = jnp.einsum("wnm,wmd->wnd", p, v,
                        preferred_element_type=jnp.float32)  # (Wb, N, hd)
        # per-head output projection accumulate (no lane-concat)
        wp_b = jnp.broadcast_to(wp_h_ref[h], (Wb, C, hd))
        contrib = jnp.einsum("wnd,wcd->wnc", oh, wp_b,
                             preferred_element_type=jnp.float32)
        out = contrib if out is None else out + contrib
    o_ref[...] = out + bp_ref[...]


# ---------------- pallas_call wrappers ----------------
def matmul_bias(x, w, b):
    M, K = x.shape
    N = w.shape[1]
    tm = _pick_row_tile(M)
    return pl.pallas_call(
        _matmul_bias_kernel,
        out_shape=jax.ShapeDtypeStruct((M, N), jnp.float32),
        grid=(M // tm,),
        in_specs=[pl.BlockSpec((tm, K), lambda i: (i, 0)),
                  pl.BlockSpec((K, N), lambda i: (0, 0)),
                  pl.BlockSpec((1, N), lambda i: (0, 0))],
        out_specs=pl.BlockSpec((tm, N), lambda i: (i, 0)),
        compiler_params=_params(("parallel",)),
    )(x, w, b.reshape(1, N))


def ln_matmul_bias(x, g, bln, w, b):
    M, K = x.shape
    N = w.shape[1]
    tm = _pick_row_tile(M)
    return pl.pallas_call(
        _ln_matmul_bias_kernel,
        out_shape=jax.ShapeDtypeStruct((M, N), jnp.float32),
        grid=(M // tm,),
        in_specs=[pl.BlockSpec((tm, K), lambda i: (i, 0)),
                  pl.BlockSpec((1, K), lambda i: (0, 0)),
                  pl.BlockSpec((1, K), lambda i: (0, 0)),
                  pl.BlockSpec((K, N), lambda i: (0, 0)),
                  pl.BlockSpec((1, N), lambda i: (0, 0))],
        out_specs=pl.BlockSpec((tm, N), lambda i: (i, 0)),
        compiler_params=_params(("parallel",)),
    )(x, g.reshape(1, K), bln.reshape(1, K), w, b.reshape(1, N))


def ln_mlp_residual(x, g, bln, w1, b1, w2, b2):
    M, C = x.shape
    H = w1.shape[1]
    tm = _pick_row_tile(M)
    return pl.pallas_call(
        _ln_mlp_residual_kernel,
        out_shape=jax.ShapeDtypeStruct((M, C), jnp.float32),
        grid=(M // tm,),
        in_specs=[pl.BlockSpec((tm, C), lambda i: (i, 0)),
                  pl.BlockSpec((1, C), lambda i: (0, 0)),
                  pl.BlockSpec((1, C), lambda i: (0, 0)),
                  pl.BlockSpec((C, H), lambda i: (0, 0)),
                  pl.BlockSpec((1, H), lambda i: (0, 0)),
                  pl.BlockSpec((H, C), lambda i: (0, 0)),
                  pl.BlockSpec((1, C), lambda i: (0, 0))],
        out_specs=pl.BlockSpec((tm, C), lambda i: (i, 0)),
        compiler_params=_params(("parallel",)),
    )(x, g.reshape(1, C), bln.reshape(1, C), w1, b1.reshape(1, H),
      w2, b2.reshape(1, C))


def window_attention(xw, valid, ln_g, ln_b, wqkv, bqkv, wproj, bproj,
                     rel_bias, mask, nW):
    BnW, N, C = xw.shape
    B = BnW // nW
    nH = rel_bias.shape[0]
    hd = C // nH
    Wm = mask.shape[0]                               # 1 (no shift) or nW (shifted)
    # weight re-layouts done once, outside the kernel (tiny)
    wqkv_t = jnp.transpose(wqkv)                                      # (3C, C)
    wp_heads = jnp.transpose(wproj.reshape(nH, hd, C), (0, 2, 1))     # (nH, C, hd)
    kern = functools.partial(_swin_attn_kernel, num_heads=nH)
    return pl.pallas_call(
        kern,
        out_shape=jax.ShapeDtypeStruct((BnW, N, C), jnp.float32),
        grid=(B,),
        in_specs=[pl.BlockSpec((nW, N, C), lambda i: (i, 0, 0)),
                  pl.BlockSpec((nW, N, 1), lambda i: (0, 0, 0)),
                  pl.BlockSpec((1, C), lambda i: (0, 0)),
                  pl.BlockSpec((1, C), lambda i: (0, 0)),
                  pl.BlockSpec((3 * C, C), lambda i: (0, 0)),
                  pl.BlockSpec((1, 3 * C), lambda i: (0, 0)),
                  pl.BlockSpec((nH, C, hd), lambda i: (0, 0, 0)),
                  pl.BlockSpec((1, C), lambda i: (0, 0)),
                  pl.BlockSpec((nH, N, N), lambda i: (0, 0, 0)),
                  pl.BlockSpec((Wm, N, N), lambda i: (0, 0, 0))],
        out_specs=pl.BlockSpec((nW, N, C), lambda i: (i, 0, 0)),
        compiler_params=_params(("parallel",)),
    )(xw, valid, ln_g.reshape(1, C), ln_b.reshape(1, C), wqkv_t,
      bqkv.reshape(1, 3 * C), wp_heads, bproj.reshape(1, C), rel_bias, mask)


# ---------------- JAX glue ----------------
def im2col_nchw(x, k, dilation, padding):
    B, C, H, W = x.shape
    xp = jnp.pad(x, ((0, 0), (0, 0), (padding, padding), (padding, padding)))
    H_out = H + 2 * padding - dilation * (k - 1)
    W_out = W + 2 * padding - dilation * (k - 1)
    cols = []
    for i in range(k):
        for j in range(k):
            cols.append(xp[:, :, i * dilation:i * dilation + H_out,
                              j * dilation:j * dilation + W_out])
    patches = jnp.stack(cols, axis=2)               # (B, C, k*k, H_out, W_out)
    return patches.reshape(B, C * k * k, H_out, W_out), H_out, W_out


def window_partition(x, ws):
    B, H, W, C = x.shape
    x = x.reshape(B, H // ws, ws, W // ws, ws, C)
    return jnp.transpose(x, (0, 1, 3, 2, 4, 5)).reshape(-1, ws, ws, C)


def window_reverse(win, ws, H, W):
    B = win.shape[0] // ((H // ws) * (W // ws))
    x = win.reshape(B, H // ws, W // ws, ws, ws, -1)
    return jnp.transpose(x, (0, 1, 3, 2, 4, 5)).reshape(B, H, W, -1)


def relative_position_index(ws):
    coords = np.stack(np.meshgrid(np.arange(ws), np.arange(ws), indexing="ij"))
    flat = coords.reshape(2, -1)
    rel = (flat[:, :, None] - flat[:, None, :]).transpose(1, 2, 0).astype(np.int64)
    rel[:, :, 0] += ws - 1
    rel[:, :, 1] += ws - 1
    rel[:, :, 0] *= 2 * ws - 1
    return rel.sum(-1)                               # (ws*ws, ws*ws)


def shifted_window_attn_mask(Hp, Wp, ws, shift):
    img = np.zeros((Hp, Wp), dtype=np.float32)
    cnt = 0
    for hs in (slice(0, -ws), slice(-ws, -shift), slice(-shift, None)):
        for wsl in (slice(0, -ws), slice(-ws, -shift), slice(-shift, None)):
            img[hs, wsl] = cnt
            cnt += 1
    mw = img.reshape(Hp // ws, ws, Wp // ws, ws).transpose(0, 2, 1, 3).reshape(-1, ws * ws)
    am = mw[:, None, :] - mw[:, :, None]
    return np.where(am != 0, -100.0, 0.0).astype(np.float32)   # (nW, N, N)


def window_valid_mask(H, W, Hp, Wp, ws, shift):
    # 1.0 for real tokens, 0.0 for zero-padded tokens, in windowed order.
    v = np.zeros((Hp, Wp), dtype=np.float32)
    v[:H, :W] = 1.0
    if shift > 0:
        v = np.roll(v, (-shift, -shift), axis=(0, 1))
    v = v.reshape(Hp // ws, ws, Wp // ws, ws).transpose(0, 2, 1, 3)
    return v.reshape(-1, ws * ws, 1)                 # (nW, N, 1)


def swin_block(x_tok, H, W, shift, p, attn_mask_np, valid_np, rel_index):
    B, L, C = x_tok.shape
    ws = WINDOW
    shortcut = x_tok
    xi = x_tok.reshape(B, H, W, C)                   # norm1 is fused in the kernel
    pad_b = (ws - H % ws) % ws
    pad_r = (ws - W % ws) % ws
    xp = jnp.pad(xi, ((0, 0), (0, pad_b), (0, pad_r), (0, 0)))
    Hp, Wp = H + pad_b, W + pad_r
    nW = (Hp // ws) * (Wp // ws)
    N = ws * ws
    if shift > 0:
        xp = jnp.roll(xp, shift=(-shift, -shift), axis=(1, 2))
        mask = jnp.asarray(attn_mask_np)             # (nW, N, N)
    else:
        mask = jnp.zeros((1, N, N), jnp.float32)     # single zero block, not per window
    xw = window_partition(xp, ws).reshape(-1, N, C)  # (B*nW, N, C) raw tokens
    valid = jnp.asarray(valid_np)                    # (nW, N, 1)
    rel_bias = jnp.transpose(
        p["rel_table"][rel_index.reshape(-1)].reshape(N, N, -1), (2, 0, 1))
    aw = window_attention(xw, valid, p["ln1_g"], p["ln1_b"], p["wqkv"], p["bqkv"],
                          p["wproj"], p["bproj"], rel_bias, mask, nW)
    xr = window_reverse(aw.reshape(-1, ws, ws, C), ws, Hp, Wp)
    if shift > 0:
        xr = jnp.roll(xr, shift=(shift, shift), axis=(1, 2))
    x = shortcut + xr[:, :H, :W, :].reshape(B, L, C)
    # fused norm2 + MLP + residual
    x = ln_mlp_residual(x.reshape(B * L, C), p["ln2_g"], p["ln2_b"],
                        p["fc1_w"], p["fc1_b"], p["fc2_w"], p["fc2_b"])
    return x.reshape(B, L, C)


def swin_encoder_forward(x, params):
    B, Cin, H, W = x.shape
    # input_proj: Conv2d(in_ch, dim, k, dilation, padding) as im2col GEMM
    patches, Ho, Wo = im2col_nchw(x, KSIZE, DILATION, PADDING)
    assert Ho == H and Wo == W
    pm = jnp.transpose(patches, (0, 2, 3, 1)).reshape(B * H * W, Cin * KSIZE * KSIZE)
    tok = matmul_bias(pm, params["in_w"], params["in_b"])       # (B*H*W, dim)
    x_tok = tok.reshape(B, H * W, DIM)                          # flatten(2).transpose(1,2)

    ws = WINDOW
    shift = ws // 2
    rel_index = relative_position_index(ws)
    Hp = int(np.ceil(H / ws)) * ws
    Wp = int(np.ceil(W / ws)) * ws
    attn_mask = shifted_window_attn_mask(Hp, Wp, ws, shift)
    valid_by_shift = {0: window_valid_mask(H, W, Hp, Wp, ws, 0),
                      shift: window_valid_mask(H, W, Hp, Wp, ws, shift)}

    for i in range(DEPTH):
        s = 0 if i % 2 == 0 else shift
        x_tok = swin_block(x_tok, H, W, s, params["blocks"][i],
                           attn_mask, valid_by_shift[s], rel_index)

    # fused final LayerNorm + 1x1 output_proj conv
    out = ln_matmul_bias(x_tok.reshape(B * H * W, DIM),
                         params["norm_g"], params["norm_b"],
                         params["out_w"], params["out_b"])
    return jnp.transpose(out.reshape(B, H, W, OUT_CH), (0, 3, 1, 2))  # back to NCHW


# ---------------- deterministic parameter init ----------------
def init_params(key):
    keys = jax.random.split(key, 64)
    ki = iter(keys)

    def w(shape, std=0.02):
        return (std * jax.random.normal(next(ki), shape)).astype(jnp.float32)

    zeros = lambda s: jnp.zeros(s, jnp.float32)
    ones = lambda s: jnp.ones(s, jnp.float32)

    params = {
        "in_w": w((IN_CH * KSIZE * KSIZE, DIM)),   # conv weight flattened (C,kh,kw)-major
        "in_b": zeros((DIM,)),
        "norm_g": ones((DIM,)), "norm_b": zeros((DIM,)),
        "out_w": w((DIM, OUT_CH)), "out_b": zeros((OUT_CH,)),
        "blocks": [],
    }
    nbias = (2 * WINDOW - 1) ** 2
    hidden = DIM * MLP_RATIO
    for _ in range(DEPTH):
        params["blocks"].append({
            "ln1_g": ones((DIM,)), "ln1_b": zeros((DIM,)),
            "wqkv": w((DIM, 3 * DIM)), "bqkv": zeros((3 * DIM,)),
            "wproj": w((DIM, DIM)), "bproj": zeros((DIM,)),
            "rel_table": w((nbias, NUM_HEADS)),
            "ln2_g": ones((DIM,)), "ln2_b": zeros((DIM,)),
            "fc1_w": w((DIM, hidden)), "fc1_b": zeros((hidden,)),
            "fc2_w": w((hidden, DIM)), "fc2_b": zeros((DIM,)),
        })
    return params


if __name__ == "__main__":
    key = jax.random.PRNGKey(0)
    pkey, xkey = jax.random.split(key)
    params = init_params(pkey)
    x = jax.random.normal(xkey, (2, IN_CH, 16, 16), dtype=jnp.float32)
    out = swin_encoder_forward(x, params)
    out = jax.block_until_ready(out)
    assert out.shape == (2, OUT_CH, 16, 16), out.shape
    assert bool(jnp.all(jnp.isfinite(out)))
    print("KERNEL_OK")
</pallas_src>

<mosaic_0001>
module attributes {stable_mosaic.version = 11 : i64} {
  func.func @_matmul_bias_kernel(%arg0: i32, %arg1: memref<512x36xf32, #tpu.memory_space<vmem>>, %arg2: memref<36x32xf32, #tpu.memory_space<vmem>>, %arg3: memref<1x32xf32, #tpu.memory_space<vmem>>, %arg4: memref<512x32xf32, #tpu.memory_space<vmem>>) attributes {dimension_semantics = [#tpu.dimension_semantics<parallel>], iteration_bounds = array<i64: 1>, scalar_prefetch = 0 : i64, scratch_operands = 0 : i64, tpu.core_type = #tpu.core_type<tc>, window_params = [{transform_indices = @transform_0, window_bounds = array<i64: 512, 36>}, {pipeline_mode = #tpu.pipeline_mode<synchronous>, transform_indices = @transform_1, window_bounds = array<i64: 36, 32>}, {pipeline_mode = #tpu.pipeline_mode<synchronous>, transform_indices = @transform_2, window_bounds = array<i64: 1, 32>}, {transform_indices = @transform_3, window_bounds = array<i64: 512, 32>}]} {
    %c0 = arith.constant 0 : index
    %c0_0 = arith.constant 0 : index
    %0 = vector.load %arg1[%c0, %c0_0] : memref<512x36xf32, #tpu.memory_space<vmem>>, vector<512x36xf32>
    %c0_1 = arith.constant 0 : index
    %c0_2 = arith.constant 0 : index
    %1 = vector.load %arg2[%c0_1, %c0_2] : memref<36x32xf32, #tpu.memory_space<vmem>>, vector<36x32xf32>
    %cst = arith.constant dense<0.000000e+00> : vector<512x32xf32>
    %2 = tpu.matmul %0, %1, %cst {dimension_numbers = #tpu.dot_dimension_numbers<[1], [0], [0], [1], [0, 0, 1, 1], [], []>} : vector<512x36xf32>, vector<36x32xf32>, vector<512x32xf32> -> vector<512x32xf32>
    %c0_3 = arith.constant 0 : index
    %c0_4 = arith.constant 0 : index
    %3 = vector.load %arg3[%c0_3, %c0_4] : memref<1x32xf32, #tpu.memory_space<vmem>>, vector<1x32xf32>
    %4 = vector.broadcast %3 : vector<1x32xf32> to vector<512x32xf32>
    %5 = arith.addf %2, %4 : vector<512x32xf32>
    %c0_5 = arith.constant 0 : index
    %c0_6 = arith.constant 0 : index
    %6 = vector.load %arg4[%c0_5, %c0_6] : memref<512x32xf32, #tpu.memory_space<vmem>>, vector<512x32xf32>
    tpu.vector_store %arg4[%c0_5, %c0_6], %5 {strides = array<i32>} : memref<512x32xf32, #tpu.memory_space<vmem>>, vector<512x32xf32>,
    return
  }
  func.func @transform_0(%arg0: i32) -> (i32, i32) {
    %c0_i32 = arith.constant 0 : i32
    %c0_i32_0 = arith.constant 0 : i32
    return %arg0, %c0_i32 : i32, i32
  }
  func.func @transform_1(%arg0: i32) -> (i32, i32) {
    %c0_i32 = arith.constant 0 : i32
    %c0_i32_0 = arith.constant 0 : i32
    %c0_i32_1 = arith.constant 0 : i32
    return %c0_i32, %c0_i32_0 : i32, i32
  }
  func.func @transform_2(%arg0: i32) -> (i32, i32) {
    %c0_i32 = arith.constant 0 : i32
    %c0_i32_0 = arith.constant 0 : i32
    %c0_i32_1 = arith.constant 0 : i32
    return %c0_i32, %c0_i32_0 : i32, i32
  }
  func.func @transform_3(%arg0: i32) -> (i32, i32) {
    %c0_i32 = arith.constant 0 : i32
    %c0_i32_0 = arith.constant 0 : i32
    return %arg0, %c0_i32 : i32, i32
  }
}

</mosaic_0001>

<llo_original>
// kernel: tpu_custom_call.1
$region0: #{tpu_custom_call.1}
  #allocation0 [shape = 'u32[]', space=smem, size = 0x4, offset = 0x4, fixed_abs, tag = 'smem constant byte address 0x4 - core index']
  #allocation1 [shape = 'u32[144,128]{1,0:T(1,128)}', space=vmem, size = 0x12000, scoped, tag = 'internal scratch']
  %s0 = inlined_call_operand.vmem [shape: f32[512,36], index: 0, kind: input, shape index: {}]
  %s1 = inlined_call_operand.vmem [shape: f32[36,32], index: 1, kind: input, shape index: {}]
  %s2 = inlined_call_operand.vmem [shape: f32[1,32], index: 2, kind: input, shape index: {}]
  %s3 = inlined_call_operand.vmem [shape: f32[512,32], index: 3, kind: output, shape index: {}]
  %s4 = sld [smem:[#allocation0]]
  $region22: #{tpu_custom_call.1} parent=0
    _
  %s6 = ssub.s32 1, %s4
  %s7 = scalar_select 0, %s6, %s4
  // Predicated region
  $region2: #{tpu_custom_call.1} parent=0 // pred_check
    _
  $region3: #{tpu_custom_call.1} parent=0 // pred_check_branch
    %9 = sbr.rel (0) target = $region5
  $region4: #{tpu_custom_call.1} parent=0 // pred_region
    _
  $region5: #{tpu_custom_call.1} parent=0 // pred_fallthru
    _
  // Predicated region
  $region6: #{tpu_custom_call.1} parent=0 // pred_check
    _
  $region7: #{tpu_custom_call.1} parent=0 // pred_check_branch
    %11 = sbr.rel (0) target = $region9
  $region8: #{tpu_custom_call.1} parent=0 // pred_region
    _
  $region9: #{tpu_custom_call.1} parent=0 // pred_fallthru
    _
  // Predicated region
  $region10: #{tpu_custom_call.1} parent=0 // pred_check
    _
  $region11: #{tpu_custom_call.1} parent=0 // pred_check_branch
    %13 = sbr.rel (0) target = $region13
  $region12: #{tpu_custom_call.1} parent=0 // pred_region
    _
  $region13: #{tpu_custom_call.1} parent=0 // pred_fallthru
    _
  %v14 = vld [vmem:[%s0] sm:$0xff]
  %v15 = vld [vmem:[%s0 + $0x8] sm:$0xff]
  %v16 = vld [vmem:[%s0 + $0x10] sm:$0xff]
  %v17 = vld [vmem:[%s0 + $0x18] sm:$0xff]
  %v18 = vld [vmem:[%s0 + $0x20] sm:$0xff]
  %v19 = vld [vmem:[%s0 + $0x28] sm:$0xff]
  %v20 = vld [vmem:[%s0 + $0x30] sm:$0xff]
  %v21 = vld [vmem:[%s0 + $0x38] sm:$0xff]
  %v22 = vld [vmem:[%s0 + $0x40] sm:$0xff]
  %v23 = vld [vmem:[%s0 + $0x48] sm:$0xff]
  %v24 = vld [vmem:[%s0 + $0x50] sm:$0xff]
  %v25 = vld [vmem:[%s0 + $0x58] sm:$0xff]
  %v26 = vld [vmem:[%s0 + $0x60] sm:$0xff]
  %v27 = vld [vmem:[%s0 + $0x68] sm:$0xff]
  %v28 = vld [vmem:[%s0 + $0x70] sm:$0xff]
  %v29 = vld [vmem:[%s0 + $0x78] sm:$0xff]
  %v30 = vld [vmem:[%s0 + $0x80] sm:$0xff]
  %v31 = vld [vmem:[%s0 + $0x88] sm:$0xff]
  %v32 = vld [vmem:[%s0 + $0x90] sm:$0xff]
  %v33 = vld [vmem:[%s0 + $0x98] sm:$0xff]
  %v34 = vld [vmem:[%s0 + $0xa0] sm:$0xff]
  %v35 = vld [vmem:[%s0 + $0xa8] sm:$0xff]
  %v36 = vld [vmem:[%s0 + $0xb0] sm:$0xff]
  %v37 = vld [vmem:[%s0 + $0xb8] sm:$0xff]
  %v38 = vld [vmem:[%s0 + $0xc0] sm:$0xff]
  %v39 = vld [vmem:[%s0 + $0xc8] sm:$0xff]
  %v40 = vld [vmem:[%s0 + $0xd0] sm:$0xff]
  %v41 = vld [vmem:[%s0 + $0xd8] sm:$0xff]
  %v42 = vld [vmem:[%s0 + $0xe0] sm:$0xff]
  %v43 = vld [vmem:[%s0 + $0xe8] sm:$0xff]
  %v44 = vld [vmem:[%s0 + $0xf0] sm:$0xff]
  %v45 = vld [vmem:[%s0 + $0xf8] sm:$0xff]
  %v46 = vld [vmem:[%s0 + $0x100] sm:$0xff]
  %v47 = vld [vmem:[%s0 + $0x108] sm:$0xff]
  %v48 = vld [vmem:[%s0 + $0x110] sm:$0xff]
  %v49 = vld [vmem:[%s0 + $0x118] sm:$0xff]
  %v50 = vld [vmem:[%s0 + $0x120] sm:$0xff]
  %v51 = vld [vmem:[%s0 + $0x128] sm:$0xff]
  %v52 = vld [vmem:[%s0 + $0x130] sm:$0xff]
  %v53 = vld [vmem:[%s0 + $0x138] sm:$0xff]
  %v54 = vld [vmem:[%s0 + $0x140] sm:$0xff]
  %v55 = vld [vmem:[%s0 + $0x148] sm:$0xff]
  %v56 = vld [vmem:[%s0 + $0x150] sm:$0xff]
  %v57 = vld [vmem:[%s0 + $0x158] sm:$0xff]
  %v58 = vld [vmem:[%s0 + $0x160] sm:$0xff]
  %v59 = vld [vmem:[%s0 + $0x168] sm:$0xff]
  %v60 = vld [vmem:[%s0 + $0x170] sm:$0xff]
  %v61 = vld [vmem:[%s0 + $0x178] sm:$0xff]
  %v62 = vld [vmem:[%s0 + $0x180] sm:$0xff]
  %v63 = vld [vmem:[%s0 + $0x188] sm:$0xff]
  %v64 = vld [vmem:[%s0 + $0x190] sm:$0xff]
  %v65 = vld [vmem:[%s0 + $0x198] sm:$0xff]
  %v66 = vld [vmem:[%s0 + $0x1a0] sm:$0xff]
  %v67 = vld [vmem:[%s0 + $0x1a8] sm:$0xff]
  %v68 = vld [vmem:[%s0 + $0x1b0] sm:$0xff]
  %v69 = vld [vmem:[%s0 + $0x1b8] sm:$0xff]
  %v70 = vld [vmem:[%s0 + $0x1c0] sm:$0xff]
  %v71 = vld [vmem:[%s0 + $0x1c8] sm:$0xff]
  %v72 = vld [vmem:[%s0 + $0x1d0] sm:$0xff]
  %v73 = vld [vmem:[%s0 + $0x1d8] sm:$0xff]
  %v74 = vld [vmem:[%s0 + $0x1e0] sm:$0xff]
  %v75 = vld [vmem:[%s0 + $0x1e8] sm:$0xff]
  %v76 = vld [vmem:[%s0 + $0x1f0] sm:$0xff]
  %v77 = vld [vmem:[%s0 + $0x1f8] sm:$0xff]
  %v78 = vld [vmem:[%s1] sm:$0xff]
  %v79 = vld [vmem:[%s1 + $0x8] sm:$0xff]
  %v80 = vld [vmem:[%s1 + $0x10] sm:$0xff]
  %v81 = vld [vmem:[%s1 + $0x18] sm:$0xff]
  %v82 = vld [vmem:[%s1 + $0x20] sm:$0xf]
  %v83 = vld [vmem:[%s2] sm:$0x1]
  %v85 = vlaneseq
  %v86 = vshrl.u32 %v85, 7
  %v87 = vsub.s32 0, %v86
  %v88 = vrot.slane %v83, %v87
  %vm90 = vcmask 293888
  %v92 = vsel %vm90, %v14, 0
  %v95 = vsel %vm90, %v15, 0
  %v98 = vsel %vm90, %v16, 0
  %v101 = vsel %vm90, %v17, 0
  %v104 = vsel %vm90, %v18, 0
  %v107 = vsel %vm90, %v19, 0
  %v110 = vsel %vm90, %v20, 0
  %v113 = vsel %vm90, %v21, 0
  %v116 = vsel %vm90, %v22, 0
  %v119 = vsel %vm90, %v23, 0
  %v122 = vsel %vm90, %v24, 0
  %v125 = vsel %vm90, %v25, 0
  %v128 = vsel %vm90, %v26, 0
  %v131 = vsel %vm90, %v27, 0
  %v134 = vsel %vm90, %v28, 0
  %v137 = vsel %vm90, %v29, 0
  %v140 = vsel %vm90, %v30, 0
  %v143 = vsel %vm90, %v31, 0
  %v146 = vsel %vm90, %v32, 0
  %v149 = vsel %vm90, %v33, 0
  %v152 = vsel %vm90, %v34, 0
  %v155 = vsel %vm90, %v35, 0
  %v158 = vsel %vm90, %v36, 0
  %v161 = vsel %vm90, %v37, 0
  %v164 = vsel %vm90, %v38, 0
  %v167 = vsel %vm90, %v39, 0
  %v170 = vsel %vm90, %v40, 0
  %v173 = vsel %vm90, %v41, 0
  %v176 = vsel %vm90, %v42, 0
  %v179 = vsel %vm90, %v43, 0
  %v182 = vsel %vm90, %v44, 0
  %v185 = vsel %vm90, %v45, 0
  %v188 = vsel %vm90, %v46, 0
  %v191 = vsel %vm90, %v47, 0
  %v194 = vsel %vm90, %v48, 0
  %v197 = vsel %vm90, %v49, 0
  %v200 = vsel %vm90, %v50, 0
  %v203 = vsel %vm90, %v51, 0
  %v206 = vsel %vm90, %v52, 0
  %v209 = vsel %vm90, %v53, 0
  %v212 = vsel %vm90, %v54, 0
  %v215 = vsel %vm90, %v55, 0
  %v218 = vsel %vm90, %v56, 0
  %v221 = vsel %vm90, %v57, 0
  %v224 = vsel %vm90, %v58, 0
  %v227 = vsel %vm90, %v59, 0
  %v230 = vsel %vm90, %v60, 0
  %v233 = vsel %vm90, %v61, 0
  %v236 = vsel %vm90, %v62, 0
  %v239 = vsel %vm90, %v63, 0
  %v242 = vsel %vm90, %v64, 0
  %v245 = vsel %vm90, %v65, 0
  %v248 = vsel %vm90, %v66, 0
  %v251 = vsel %vm90, %v67, 0
  %v254 = vsel %vm90, %v68, 0
  %v257 = vsel %vm90, %v69, 0
  %v260 = vsel %vm90, %v70, 0
  %v263 = vsel %vm90, %v71, 0
  %v266 = vsel %vm90, %v72, 0
  %v269 = vsel %vm90, %v73, 0
  %v272 = vsel %vm90, %v74, 0
  %v275 = vsel %vm90, %v75, 0
  %v278 = vsel %vm90, %v76, 0
  %v281 = vsel %vm90, %v77, 0
  %vm283 = vcmask 1043456
  %v285 = vsel %vm283, %v82, 0
  %287 = vmatprep.subr.mxu0 0.0
  %288 = vmatpush1.msra.mxu0 %v78
  %289 = vmatprep.subr.mxu0 0.0
  %290 = vmatpush1.msra.mxu0 %v79
  %291 = vmatprep.subr.mxu0 0.0
  %292 = vmatpush1.msra.mxu0 %v80
  %293 = vmatprep.subr.mxu0 0.0
  %294 = vmatpush1.msra.mxu0 %v81
  %295 = vmatprep.subr.mxu0 0.0
  %296 = vmatpush1.msra.mxu0 %v285
  %297 = vmatprep.subr.mxu0 0.0
  %298 = vmatpush1.msra.mxu0 0.0
  %299 = vmatprep.subr.mxu0 0.0
  %300 = vmatpush1.msra.mxu0 0.0
  %301 = vmatprep.subr.mxu0 0.0
  %302 = vmatpush1.msra.mxu0 0.0
  %303 = vmatprep.subr.mxu0 0.0
  %304 = vmatpush1.msra.mxu0 0.0
  %305 = vmatprep.subr.mxu0 0.0
  %306 = vmatpush1.msra.mxu0 0.0
  %307 = vmatprep.subr.mxu0 0.0
  %308 = vmatpush1.msra.mxu0 0.0
  %309 = vmatprep.subr.mxu0 0.0
  %310 = vmatpush1.msra.mxu0 0.0
  %311 = vmatprep.subr.mxu0 0.0
  %312 = vmatpush1.msra.mxu0 0.0
  %313 = vmatprep.subr.mxu0 0.0
  %314 = vmatpush1.msra.mxu0 0.0
  %315 = vmatprep.subr.mxu0 0.0
  %316 = vmatpush1.msra.mxu0 0.0
  %317 = vmatprep.subr.mxu0 0.0
  %318 = vmatpush1.msra.mxu0 0.0
  %319 = vmatprep.subr.mxu0 0.0
  %320 = vmatpush1.msra.mxu0 0.0
  %321 = vmatprep.subr.mxu0 0.0
  %322 = vmatpush1.msra.mxu0 0.0
  %323 = vmatprep.subr.mxu0 0.0
  %324 = vmatpush1.msra.mxu0 0.0
  %325 = vmatprep.subr.mxu0 0.0
  %326 = vmatpush1.msra.mxu0 0.0
  %327 = vmatprep.subr.mxu0 0.0
  %328 = vmatpush1.msra.mxu0 0.0
  %329 = vmatprep.subr.mxu0 0.0
  %330 = vmatpush1.msra.mxu0 0.0
  %331 = vmatprep.subr.mxu0 0.0
  %332 = vmatpush1.msra.mxu0 0.0
  %333 = vmatprep.subr.mxu0 0.0
  %334 = vmatpush1.msra.mxu0 0.0
  %335 = vmatprep.subr.mxu0 0.0
  %336 = vmatpush1.msra.mxu0 0.0
  %337 = vmatprep.subr.mxu0 0.0
  %338 = vmatpush1.msra.mxu0 0.0
  %339 = vmatprep.subr.mxu0 0.0
  %340 = vmatpush1.msra.mxu0 0.0
  %341 = vmatprep.subr.mxu0 0.0
  %342 = vmatpush1.msra.mxu0 0.0
  %343 = vmatprep.subr.mxu0 0.0
  %344 = vmatpush1.msra.mxu0 0.0
  %345 = vmatprep.subr.mxu0 0.0
  %346 = vmatpush1.msra.mxu0 0.0
  %347 = vmatprep.subr.mxu0 0.0
  %348 = vmatpush1.msra.mxu0 0.0
  %349 = vmatprep.subr.mxu0 0.0
  %350 = vmatpush1.msra.mxu0 0.0
  %351 = vmatprep.mubr.f32.mxu0 0.0
  %352 = vmatmul.mubr.f32.gmra.mrb[0].mxu0 %v92
  %v353 = vpop.f32.mrb[0].mxu0
  %v354 = vadd.f32 %v88, %v353
  %v355 = vpop.f32.mrb[0].mxu0
  %356 = vmatprep.mubr.f32.mxu0 0.0
  %357 = vmatmul.mubr.f32.gmra.mrb[0].mxu0 %v95
  %v358 = vpop.f32.mrb[0].mxu0
  %v359 = vadd.f32 %v88, %v358
  %v360 = vpop.f32.mrb[0].mxu0
  %361 = vmatprep.mubr.f32.mxu0 0.0
  %362 = vmatmul.mubr.f32.gmra.mrb[0].mxu0 %v98
  %v363 = vpop.f32.mrb[0].mxu0
  %v364 = vadd.f32 %v88, %v363
  %v365 = vpop.f32.mrb[0].mxu0
  %366 = vmatprep.mubr.f32.mxu0 0.0
  %367 = vmatmul.mubr.f32.gmra.mrb[0].mxu0 %v101
  %v368 = vpop.f32.mrb[0].mxu0
  %v369 = vadd.f32 %v88, %v368
  %v370 = vpop.f32.mrb[0].mxu0
  %371 = vmatprep.mubr.f32.mxu0 0.0
  %372 = vmatmul.mubr.f32.gmra.mrb[0].mxu0 %v104
  %v373 = vpop.f32.mrb[0].mxu0
  %v374 = vadd.f32 %v88, %v373
  %v375 = vpop.f32.mrb[0].mxu0
  %376 = vmatprep.mubr.f32.mxu0 0.0
  %377 = vmatmul.mubr.f32.gmra.mrb[0].mxu0 %v107
  %v378 = vpop.f32.mrb[0].mxu0
  %v379 = vadd.f32 %v88, %v378
  %v380 = vpop.f32.mrb[0].mxu0
  %381 = vmatprep.mubr.f32.mxu0 0.0
  %382 = vmatmul.mubr.f32.gmra.mrb[0].mxu0 %v110
  %v383 = vpop.f32.mrb[0].mxu0
  %v384 = vadd.f32 %v88, %v383
  %v385 = vpop.f32.mrb[0].mxu0
  %386 = vmatprep.mubr.f32.mxu0 0.0
  %387 = vmatmul.mubr.f32.gmra.mrb[0].mxu0 %v113
  %v388 = vpop.f32.mrb[0].mxu0
  %v389 = vadd.f32 %v88, %v388
  %v390 = vpop.f32.mrb[0].mxu0
  %391 = vmatprep.mubr.f32.mxu0 0.0
  %392 = vmatmul.mubr.f32.gmra.mrb[0].mxu0 %v116
  %v393 = vpop.f32.mrb[0].mxu0
  %v394 = vadd.f32 %v88, %v393
  %v395 = vpop.f32.mrb[0].mxu0
  %396 = vmatprep.mubr.f32.mxu0 0.0
  %397 = vmatmul.mubr.f32.gmra.mrb[0].mxu0 %v119
  %v398 = vpop.f32.mrb[0].mxu0
  %v399 = vadd.f32 %v88, %v398
  %v400 = vpop.f32.mrb[0].mxu0
  %401 = vmatprep.mubr.f32.mxu0 0.0
  %402 = vmatmul.mubr.f32.gmra.mrb[0].mxu0 %v122
  %v403 = vpop.f32.mrb[0].mxu0
  %v404 = vadd.f32 %v88, %v403
  %v405 = vpop.f32.mrb[0].mxu0
  %406 = vmatprep.mubr.f32.mxu0 0.0
  %407 = vmatmul.mubr.f32.gmra.mrb[0].mxu0 %v125
  %v408 = vpop.f32.mrb[0].mxu0
  %v409 = vadd.f32 %v88, %v408
  %v410 = vpop.f32.mrb[0].mxu0
  %411 = vmatprep.mubr.f32.mxu0 0.0
  %412 = vmatmul.mubr.f32.gmra.mrb[0].mxu0 %v128
  %v413 = vpop.f32.mrb[0].mxu0
  %v414 = vadd.f32 %v88, %v413
  %v415 = vpop.f32.mrb[0].mxu0
  %416 = vmatprep.mubr.f32.mxu0 0.0
  %417 = vmatmul.mubr.f32.gmra.mrb[0].mxu0 %v131
  %v418 = vpop.f32.mrb[0].mxu0
  %v419 = vadd.f32 %v88, %v418
  %v420 = vpop.f32.mrb[0].mxu0
  %421 = vmatprep.mubr.f32.mxu0 0.0
  %422 = vmatmul.mubr.f32.gmra.mrb[0].mxu0 %v134
  %v423 = vpop.f32.mrb[0].mxu0
  %v424 = vadd.f32 %v88, %v423
  %v425 = vpop.f32.mrb[0].mxu0
  %426 = vmatprep.mubr.f32.mxu0 0.0
  %427 = vmatmul.mubr.f32.gmra.mrb[0].mxu0 %v137
  %v428 = vpop.f32.mrb[0].mxu0
  %v429 = vadd.f32 %v88, %v428
  %v430 = vpop.f32.mrb[0].mxu0
  %431 = vmatprep.mubr.f32.mxu0 0.0
  %432 = vmatmul.mubr.f32.gmra.mrb[0].mxu0 %v140
  %v433 = vpop.f32.mrb[0].mxu0
  %v434 = vadd.f32 %v88, %v433
  %v435 = vpop.f32.mrb[0].mxu0
  %436 = vmatprep.mubr.f32.mxu0 0.0
  %437 = vmatmul.mubr.f32.gmra.mrb[0].mxu0 %v143
  %v438 = vpop.f32.mrb[0].mxu0
  %v439 = vadd.f32 %v88, %v438
  %v440 = vpop.f32.mrb[0].mxu0
  %441 = vmatprep.mubr.f32.mxu0 0.0
  %442 = vmatmul.mubr.f32.gmra.mrb[0].mxu0 %v146
  %v443 = vpop.f32.mrb[0].mxu0
  %v444 = vadd.f32 %v88, %v443
  %v445 = vpop.f32.mrb[0].mxu0
  %446 = vmatprep.mubr.f32.mxu0 0.0
  %447 = vmatmul.mubr.f32.gmra.mrb[0].mxu0 %v149
  %v448 = vpop.f32.mrb[0].mxu0
  %v449 = vadd.f32 %v88, %v448
  %v450 = vpop.f32.mrb[0].mxu0
  %451 = vmatprep.mubr.f32.mxu0 0.0
  %452 = vmatmul.mubr.f32.gmra.mrb[0].mxu0 %v152
  %v453 = vpop.f32.mrb[0].mxu0
  %v454 = vadd.f32 %v88, %v453
  %v455 = vpop.f32.mrb[0].mxu0
  %456 = vmatprep.mubr.f32.mxu0 0.0
  %457 = vmatmul.mubr.f32.gmra.mrb[0].mxu0 %v155
  %v458 = vpop.f32.mrb[0].mxu0
  %v459 = vadd.f32 %v88, %v458
  %v460 = vpop.f32.mrb[0].mxu0
  %461 = vmatprep.mubr.f32.mxu0 0.0
  %462 = vmatmul.mubr.f32.gmra.mrb[0].mxu0 %v158
  %v463 = vpop.f32.mrb[0].mxu0
  %v464 = vadd.f32 %v88, %v463
  %v465 = vpop.f32.mrb[0].mxu0
  %466 = vmatprep.mubr.f32.mxu0 0.0
  %467 = vmatmul.mubr.f32.gmra.mrb[0].mxu0 %v161
  %v468 = vpop.f32.mrb[0].mxu0
  %v469 = vadd.f32 %v88, %v468
  %v470 = vpop.f32.mrb[0].mxu0
  %471 = vmatprep.mubr.f32.mxu0 0.0
  %472 = vmatmul.mubr.f32.gmra.mrb[0].mxu0 %v164
  %v473 = vpop.f32.mrb[0].mxu0
  %v474 = vadd.f32 %v88, %v473
  %v475 = vpop.f32.mrb[0].mxu0
  %476 = vmatprep.mubr.f32.mxu0 0.0
  %477 = vmatmul.mubr.f32.gmra.mrb[0].mxu0 %v167
  %v478 = vpop.f32.mrb[0].mxu0
  %v479 = vadd.f32 %v88, %v478
  %v480 = vpop.f32.mrb[0].mxu0
  %481 = vmatprep.mubr.f32.mxu0 0.0
  %482 = vmatmul.mubr.f32.gmra.mrb[0].mxu0 %v170
  %v483 = vpop.f32.mrb[0].mxu0
  %v484 = vadd.f32 %v88, %v483
  %v485 = vpop.f32.mrb[0].mxu0
  %486 = vmatprep.mubr.f32.mxu0 0.0
  %487 = vmatmul.mubr.f32.gmra.mrb[0].mxu0 %v173
  %v488 = vpop.f32.mrb[0].mxu0
  %v489 = vadd.f32 %v88, %v488
  %v490 = vpop.f32.mrb[0].mxu0
  %491 = vmatprep.mubr.f32.mxu0 0.0
  %492 = vmatmul.mubr.f32.gmra.mrb[0].mxu0 %v176
  %v493 = vpop.f32.mrb[0].mxu0
  %v494 = vadd.f32 %v88, %v493
  %v495 = vpop.f32.mrb[0].mxu0
  %496 = vmatprep.mubr.f32.mxu0 0.0
  %497 = vmatmul.mubr.f32.gmra.mrb[0].mxu0 %v179
  %v498 = vpop.f32.mrb[0].mxu0
  %v499 = vadd.f32 %v88, %v498
  %v500 = vpop.f32.mrb[0].mxu0
  %501 = vmatprep.mubr.f32.mxu0 0.0
  %502 = vmatmul.mubr.f32.gmra.mrb[0].mxu0 %v182
  %v503 = vpop.f32.mrb[0].mxu0
  %v504 = vadd.f32 %v88, %v503
  %v505 = vpop.f32.mrb[0].mxu0
  %506 = vmatprep.mubr.f32.mxu0 0.0
  %507 = vmatmul.mubr.f32.gmra.mrb[0].mxu0 %v185
  %v508 = vpop.f32.mrb[0].mxu0
  %v509 = vadd.f32 %v88, %v508
  %v510 = vpop.f32.mrb[0].mxu0
  %511 = vmatprep.mubr.f32.mxu0 0.0
  %512 = vmatmul.mubr.f32.gmra.mrb[0].mxu0 %v188
  %v513 = vpop.f32.mrb[0].mxu0
  %v514 = vadd.f32 %v88, %v513
  %v515 = vpop.f32.mrb[0].mxu0
  %516 = vmatprep.mubr.f32.mxu0 0.0
  %517 = vmatmul.mubr.f32.gmra.mrb[0].mxu0 %v191
  %v518 = vpop.f32.mrb[0].mxu0
  %v519 = vadd.f32 %v88, %v518
  %v520 = vpop.f32.mrb[0].mxu0
  %521 = vmatprep.mubr.f32.mxu0 0.0
  %522 = vmatmul.mubr.f32.gmra.mrb[0].mxu0 %v194
  %v523 = vpop.f32.mrb[0].mxu0
  %v524 = vadd.f32 %v88, %v523
  %v525 = vpop.f32.mrb[0].mxu0
  %526 = vmatprep.mubr.f32.mxu0 0.0
  %527 = vmatmul.mubr.f32.gmra.mrb[0].mxu0 %v197
  %v528 = vpop.f32.mrb[0].mxu0
  %v529 = vadd.f32 %v88, %v528
  %v530 = vpop.f32.mrb[0].mxu0
  %531 = vmatprep.mubr.f32.mxu0 0.0
  %532 = vmatmul.mubr.f32.gmra.mrb[0].mxu0 %v200
  %v533 = vpop.f32.mrb[0].mxu0
  %v534 = vadd.f32 %v88, %v533
  %v535 = vpop.f32.mrb[0].mxu0
  %536 = vmatprep.mubr.f32.mxu0 0.0
  %537 = vmatmul.mubr.f32.gmra.mrb[0].mxu0 %v203
  %v538 = vpop.f32.mrb[0].mxu0
  %v539 = vadd.f32 %v88, %v538
  %v540 = vpop.f32.mrb[0].mxu0
  %541 = vmatprep.mubr.f32.mxu0 0.0
  %542 = vmatmul.mubr.f32.gmra.mrb[0].mxu0 %v206
  %v543 = vpop.f32.mrb[0].mxu0
  %v544 = vadd.f32 %v88, %v543
  %v545 = vpop.f32.mrb[0].mxu0
  %546 = vmatprep.mubr.f32.mxu0 0.0
  %547 = vmatmul.mubr.f32.gmra.mrb[0].mxu0 %v209
  %v548 = vpop.f32.mrb[0].mxu0
  %v549 = vadd.f32 %v88, %v548
  %v550 = vpop.f32.mrb[0].mxu0
  %551 = vmatprep.mubr.f32.mxu0 0.0
  %552 = vmatmul.mubr.f32.gmra.mrb[0].mxu0 %v212
  %v553 = vpop.f32.mrb[0].mxu0
  %v554 = vadd.f32 %v88, %v553
  %v555 = vpop.f32.mrb[0].mxu0
  %556 = vmatprep.mubr.f32.mxu0 0.0
  %557 = vmatmul.mubr.f32.gmra.mrb[0].mxu0 %v215
  %v558 = vpop.f32.mrb[0].mxu0
  %v559 = vadd.f32 %v88, %v558
  %v560 = vpop.f32.mrb[0].mxu0
  %561 = vmatprep.mubr.f32.mxu0 0.0
  %562 = vmatmul.mubr.f32.gmra.mrb[0].mxu0 %v218
  %v563 = vpop.f32.mrb[0].mxu0
  %v564 = vadd.f32 %v88, %v563
  %v565 = vpop.f32.mrb[0].mxu0
  %566 = vmatprep.mubr.f32.mxu0 0.0
  %567 = vmatmul.mubr.f32.gmra.mrb[0].mxu0 %v221
  %v568 = vpop.f32.mrb[0].mxu0
  %v569 = vadd.f32 %v88, %v568
  %v570 = vpop.f32.mrb[0].mxu0
  %571 = vmatprep.mubr.f32.mxu0 0.0
  %572 = vmatmul.mubr.f32.gmra.mrb[0].mxu0 %v224
  %v573 = vpop.f32.mrb[0].mxu0
  %v574 = vadd.f32 %v88, %v573
  %v575 = vpop.f32.mrb[0].mxu0
  %576 = vmatprep.mubr.f32.mxu0 0.0
  %577 = vmatmul.mubr.f32.gmra.mrb[0].mxu0 %v227
  %v578 = vpop.f32.mrb[0].mxu0
  %v579 = vadd.f32 %v88, %v578
  %v580 = vpop.f32.mrb[0].mxu0
  %581 = vmatprep.mubr.f32.mxu0 0.0
  %582 = vmatmul.mubr.f32.gmra.mrb[0].mxu0 %v230
  %v583 = vpop.f32.mrb[0].mxu0
  %v584 = vadd.f32 %v88, %v583
  %v585 = vpop.f32.mrb[0].mxu0
  %586 = vmatprep.mubr.f32.mxu0 0.0
  %587 = vmatmul.mubr.f32.gmra.mrb[0].mxu0 %v233
  %v588 = vpop.f32.mrb[0].mxu0
  %v589 = vadd.f32 %v88, %v588
  %v590 = vpop.f32.mrb[0].mxu0
  %591 = vmatprep.mubr.f32.mxu0 0.0
  %592 = vmatmul.mubr.f32.gmra.mrb[0].mxu0 %v236
  %v593 = vpop.f32.mrb[0].mxu0
  %v594 = vadd.f32 %v88, %v593
  %v595 = vpop.f32.mrb[0].mxu0
  %596 = vmatprep.mubr.f32.mxu0 0.0
  %597 = vmatmul.mubr.f32.gmra.mrb[0].mxu0 %v239
  %v598 = vpop.f32.mrb[0].mxu0
  %v599 = vadd.f32 %v88, %v598
  %v600 = vpop.f32.mrb[0].mxu0
  %601 = vmatprep.mubr.f32.mxu0 0.0
  %602 = vmatmul.mubr.f32.gmra.mrb[0].mxu0 %v242
  %v603 = vpop.f32.mrb[0].mxu0
  %v604 = vadd.f32 %v88, %v603
  %v605 = vpop.f32.mrb[0].mxu0
  %606 = vmatprep.mubr.f32.mxu0 0.0
  %607 = vmatmul.mubr.f32.gmra.mrb[0].mxu0 %v245
  %v608 = vpop.f32.mrb[0].mxu0
  %v609 = vadd.f32 %v88, %v608
  %v610 = vpop.f32.mrb[0].mxu0
  %611 = vmatprep.mubr.f32.mxu0 0.0
  %612 = vmatmul.mubr.f32.gmra.mrb[0].mxu0 %v248
  %v613 = vpop.f32.mrb[0].mxu0
  %v614 = vadd.f32 %v88, %v613
  %v615 = vpop.f32.mrb[0].mxu0
  %616 = vmatprep.mubr.f32.mxu0 0.0
  %617 = vmatmul.mubr.f32.gmra.mrb[0].mxu0 %v251
  %v618 = vpop.f32.mrb[0].mxu0
  %v619 = vadd.f32 %v88, %v618
  %v620 = vpop.f32.mrb[0].mxu0
  %621 = vmatprep.mubr.f32.mxu0 0.0
  %622 = vmatmul.mubr.f32.gmra.mrb[0].mxu0 %v254
  %v623 = vpop.f32.mrb[0].mxu0
  %v624 = vadd.f32 %v88, %v623
  %v625 = vpop.f32.mrb[0].mxu0
  %626 = vmatprep.mubr.f32.mxu0 0.0
  %627 = vmatmul.mubr.f32.gmra.mrb[0].mxu0 %v257
  %v628 = vpop.f32.mrb[0].mxu0
  %v629 = vadd.f32 %v88, %v628
  %v630 = vpop.f32.mrb[0].mxu0
  %631 = vmatprep.mubr.f32.mxu0 0.0
  %632 = vmatmul.mubr.f32.gmra.mrb[0].mxu0 %v260
  %v633 = vpop.f32.mrb[0].mxu0
  %v634 = vadd.f32 %v88, %v633
  %v635 = vpop.f32.mrb[0].mxu0
  %636 = vmatprep.mubr.f32.mxu0 0.0
  %637 = vmatmul.mubr.f32.gmra.mrb[0].mxu0 %v263
  %v638 = vpop.f32.mrb[0].mxu0
  %v639 = vadd.f32 %v88, %v638
  %v640 = vpop.f32.mrb[0].mxu0
  %641 = vmatprep.mubr.f32.mxu0 0.0
  %642 = vmatmul.mubr.f32.gmra.mrb[0].mxu0 %v266
  %v643 = vpop.f32.mrb[0].mxu0
  %v644 = vadd.f32 %v88, %v643
  %v645 = vpop.f32.mrb[0].mxu0
  %646 = vmatprep.mubr.f32.mxu0 0.0
  %647 = vmatmul.mubr.f32.gmra.mrb[0].mxu0 %v269
  %v648 = vpop.f32.mrb[0].mxu0
  %v649 = vadd.f32 %v88, %v648
  %v650 = vpop.f32.mrb[0].mxu0
  %651 = vmatprep.mubr.f32.mxu0 0.0
  %652 = vmatmul.mubr.f32.gmra.mrb[0].mxu0 %v272
  %v653 = vpop.f32.mrb[0].mxu0
  %v654 = vadd.f32 %v88, %v653
  %v655 = vpop.f32.mrb[0].mxu0
  %656 = vmatprep.mubr.f32.mxu0 0.0
  %657 = vmatmul.mubr.f32.gmra.mrb[0].mxu0 %v275
  %v658 = vpop.f32.mrb[0].mxu0
  %v659 = vadd.f32 %v88, %v658
  %v660 = vpop.f32.mrb[0].mxu0
  %661 = vmatprep.mubr.f32.mxu0 0.0
  %662 = vmatmul.mubr.f32.gmra.mrb[0].mxu0 %v278
  %v663 = vpop.f32.mrb[0].mxu0
  %v664 = vadd.f32 %v88, %v663
  %v665 = vpop.f32.mrb[0].mxu0
  %666 = vmatprep.mubr.f32.mxu0 0.0
  %667 = vmatmul.mubr.f32.gmra.mrb[0].mxu0 %v281
  %v668 = vpop.f32.mrb[0].mxu0
  %v669 = vadd.f32 %v88, %v668
  %v670 = vpop.f32.mrb[0].mxu0
  %671 = vdwg.mxu0
  %vm672 = vcmask 261120
  %673 = vst.msk [vmem:[%s3] sm:$0xff] %vm672, %v354
  %674 = vst.msk [vmem:[%s3 + $0x8] sm:$0xff] %vm672, %v359
  %675 = vst.msk [vmem:[%s3 + $0x10] sm:$0xff] %vm672, %v364
  %676 = vst.msk [vmem:[%s3 + $0x18] sm:$0xff] %vm672, %v369
  %677 = vst.msk [vmem:[%s3 + $0x20] sm:$0xff] %vm672, %v374
  %678 = vst.msk [vmem:[%s3 + $0x28] sm:$0xff] %vm672, %v379
  %679 = vst.msk [vmem:[%s3 + $0x30] sm:$0xff] %vm672, %v384
  %680 = vst.msk [vmem:[%s3 + $0x38] sm:$0xff] %vm672, %v389
  %681 = vst.msk [vmem:[%s3 + $0x40] sm:$0xff] %vm672, %v394
  %682 = vst.msk [vmem:[%s3 + $0x48] sm:$0xff] %vm672, %v399
  %683 = vst.msk [vmem:[%s3 + $0x50] sm:$0xff] %vm672, %v404
  %684 = vst.msk [vmem:[%s3 + $0x58] sm:$0xff] %vm672, %v409
  %685 = vst.msk [vmem:[%s3 + $0x60] sm:$0xff] %vm672, %v414
  %686 = vst.msk [vmem:[%s3 + $0x68] sm:$0xff] %vm672, %v419
  %687 = vst.msk [vmem:[%s3 + $0x70] sm:$0xff] %vm672, %v424
  %688 = vst.msk [vmem:[%s3 + $0x78] sm:$0xff] %vm672, %v429
  %689 = vst.msk [vmem:[%s3 + $0x80] sm:$0xff] %vm672, %v434
  %690 = vst.msk [vmem:[%s3 + $0x88] sm:$0xff] %vm672, %v439
  %691 = vst.msk [vmem:[%s3 + $0x90] sm:$0xff] %vm672, %v444
  %692 = vst.msk [vmem:[%s3 + $0x98] sm:$0xff] %vm672, %v449
  %693 = vst.msk [vmem:[%s3 + $0xa0] sm:$0xff] %vm672, %v454
  %694 = vst.msk [vmem:[%s3 + $0xa8] sm:$0xff] %vm672, %v459
  %695 = vst.msk [vmem:[%s3 + $0xb0] sm:$0xff] %vm672, %v464
  %696 = vst.msk [vmem:[%s3 + $0xb8] sm:$0xff] %vm672, %v469
  %697 = vst.msk [vmem:[%s3 + $0xc0] sm:$0xff] %vm672, %v474
  %698 = vst.msk [vmem:[%s3 + $0xc8] sm:$0xff] %vm672, %v479
  %699 = vst.msk [vmem:[%s3 + $0xd0] sm:$0xff] %vm672, %v484
  %700 = vst.msk [vmem:[%s3 + $0xd8] sm:$0xff] %vm672, %v489
  %701 = vst.msk [vmem:[%s3 + $0xe0] sm:$0xff] %vm672, %v494
  %702 = vst.msk [vmem:[%s3 + $0xe8] sm:$0xff] %vm672, %v499
  %703 = vst.msk [vmem:[%s3 + $0xf0] sm:$0xff] %vm672, %v504
  %704 = vst.msk [vmem:[%s3 + $0xf8] sm:$0xff] %vm672, %v509
  %705 = vst.msk [vmem:[%s3 + $0x100] sm:$0xff] %vm672, %v514
  %706 = vst.msk [vmem:[%s3 + $0x108] sm:$0xff] %vm672, %v519
  %707 = vst.msk [vmem:[%s3 + $0x110] sm:$0xff] %vm672, %v524
  %708 = vst.msk [vmem:[%s3 + $0x118] sm:$0xff] %vm672, %v529
  %709 = vst.msk [vmem:[%s3 + $0x120] sm:$0xff] %vm672, %v534
  %710 = vst.msk [vmem:[%s3 + $0x128] sm:$0xff] %vm672, %v539
  %711 = vst.msk [vmem:[%s3 + $0x130] sm:$0xff] %vm672, %v544
  %712 = vst.msk [vmem:[%s3 + $0x138] sm:$0xff] %vm672, %v549
  %713 = vst.msk [vmem:[%s3 + $0x140] sm:$0xff] %vm672, %v554
  %714 = vst.msk [vmem:[%s3 + $0x148] sm:$0xff] %vm672, %v559
  %715 = vst.msk [vmem:[%s3 + $0x150] sm:$0xff] %vm672, %v564
  %716 = vst.msk [vmem:[%s3 + $0x158] sm:$0xff] %vm672, %v569
  %717 = vst.msk [vmem:[%s3 + $0x160] sm:$0xff] %vm672, %v574
  %718 = vst.msk [vmem:[%s3 + $0x168] sm:$0xff] %vm672, %v579
  %719 = vst.msk [vmem:[%s3 + $0x170] sm:$0xff] %vm672, %v584
  %720 = vst.msk [vmem:[%s3 + $0x178] sm:$0xff] %vm672, %v589
  %721 = vst.msk [vmem:[%s3 + $0x180] sm:$0xff] %vm672, %v594
  %722 = vst.msk [vmem:[%s3 + $0x188] sm:$0xff] %vm672, %v599
  %723 = vst.msk [vmem:[%s3 + $0x190] sm:$0xff] %vm672, %v604
  %724 = vst.msk [vmem:[%s3 + $0x198] sm:$0xff] %vm672, %v609
  %725 = vst.msk [vmem:[%s3 + $0x1a0] sm:$0xff] %vm672, %v614
  %726 = vst.msk [vmem:[%s3 + $0x1a8] sm:$0xff] %vm672, %v619
  %727 = vst.msk [vmem:[%s3 + $0x1b0] sm:$0xff] %vm672, %v624
  %728 = vst.msk [vmem:[%s3 + $0x1b8] sm:$0xff] %vm672, %v629
  %729 = vst.msk [vmem:[%s3 + $0x1c0] sm:$0xff] %vm672, %v634
  %730 = vst.msk [vmem:[%s3 + $0x1c8] sm:$0xff] %vm672, %v639
  %731 = vst.msk [vmem:[%s3 + $0x1d0] sm:$0xff] %vm672, %v644
  %732 = vst.msk [vmem:[%s3 + $0x1d8] sm:$0xff] %vm672, %v649
  %733 = vst.msk [vmem:[%s3 + $0x1e0] sm:$0xff] %vm672, %v654
  %734 = vst.msk [vmem:[%s3 + $0x1e8] sm:$0xff] %vm672, %v659
  %735 = vst.msk [vmem:[%s3 + $0x1f0] sm:$0xff] %vm672, %v664
  %736 = vst.msk [vmem:[%s3 + $0x1f8] sm:$0xff] %vm672, %v669
  // Predicated region
  $region14: #{tpu_custom_call.1} parent=0 // pred_check
    _
  $region15: #{tpu_custom_call.1} parent=0 // pred_check_branch
    %738 = sbr.rel (0) target = $region17
  $region16: #{tpu_custom_call.1} parent=0 // pred_region
    _
  $region17: #{tpu_custom_call.1} parent=0 // pred_fallthru
    _
  // Predicated region
  $region18: #{tpu_custom_call.1} parent=0 // pred_check
    _
  $region19: #{tpu_custom_call.1} parent=0 // pred_check_branch
    %740 = sbr.rel (0) target = $region21
  $region20: #{tpu_custom_call.1} parent=0 // pred_region
    _
  $region21: #{tpu_custom_call.1} parent=0 // pred_fallthru
    _

</llo_original>
